<compile_context>
chip_gen: v7x
topology: tpu7x:2x2x1
jax: 0.10.0
libtpu: 0.0.40
codegen_flags: <defaults>
</compile_context>

<pallas_src>
import jax
import jax.numpy as jnp
from jax.experimental import pallas as pl
from jax.experimental.pallas import tpu as pltpu


_LANE = 128
_SUBLANE = 8
_VMEM_STEP_BUDGET = 8 * 1024 * 1024   # per-grid-step footprint incl. 2x buffers
_MAX_ROW_TILE = 1024
_MIN_PALLAS_ELEMS = 16 * 1024         # below this, fused XLA slicing/concat wins


def _row_tile(n_rows: int, bytes_per_row_per_step: int) -> int:
    """Largest row tile (multiple of 8, <= 1024) whose double-buffered
    per-step VMEM footprint stays under the budget."""
    tn = _VMEM_STEP_BUDGET // max(1, 2 * bytes_per_row_per_step)
    tn = (tn // _SUBLANE) * _SUBLANE
    tn = max(_SUBLANE, min(tn, _MAX_ROW_TILE))
    if tn >= n_rows:
        return n_rows          # single full-height block (always a legal shape)
    return tn


# ----------------------------------------------------------------------------
# Kernels (operate on one row tile per grid step)
# ----------------------------------------------------------------------------
def _concat_kernel(a_ref, b_ref, o_ref):
    """o[:, :Ha] = a ; o[:, Ha:] = b   (concat along the lane/feature axis)."""
    ha = a_ref.shape[-1]
    o_ref[:, :ha] = a_ref[...]
    o_ref[:, ha:] = b_ref[...]


def _split_kernel(x_ref, o1_ref, o2_ref):
    """o1 = x[:, :H1] ; o2 = x[:, H1:]   (split along the lane/feature axis)."""
    h1 = o1_ref.shape[-1]
    o1_ref[...] = x_ref[:, :h1]
    o2_ref[...] = x_ref[:, h1:]


# ----------------------------------------------------------------------------
# Wrappers: row-tiled, pipelined Pallas copies with an XLA fallback for
# tiny or lane-misaligned problems.
# ----------------------------------------------------------------------------
def concat_features(a: jax.Array, b: jax.Array, *, use_pallas=None) -> jax.Array:
    assert a.ndim == 2 and b.ndim == 2 and a.shape[0] == b.shape[0]
    assert a.dtype == b.dtype
    n, ha = a.shape
    hb = b.shape[1]
    c = ha + hb

    if use_pallas is None:
        use_pallas = (ha % _LANE == 0) and (n * c >= _MIN_PALLAS_ELEMS)
    if not use_pallas:
        # Tiny or misaligned: let XLA fuse/elide the copy.
        return jnp.concatenate([a, b], axis=1)

    itemsize = jnp.dtype(a.dtype).itemsize
    tn = _row_tile(n, 2 * c * itemsize)      # (ha + hb + c) bytes per row per step
    grid = (pl.cdiv(n, tn),)

    return pl.pallas_call(
        _concat_kernel,
        out_shape=jax.ShapeDtypeStruct((n, c), a.dtype),
        grid=grid,
        in_specs=[
            pl.BlockSpec((tn, ha), lambda i: (i, 0)),
            pl.BlockSpec((tn, hb), lambda i: (i, 0)),
        ],
        out_specs=pl.BlockSpec((tn, c), lambda i: (i, 0)),
        compiler_params=pltpu.CompilerParams(dimension_semantics=("parallel",)),
        cost_estimate=pl.CostEstimate(
            flops=0, transcendentals=0, bytes_accessed=2 * n * c * itemsize),
    )(a, b)


def split_features(x: jax.Array, *, use_pallas=None):
    assert x.ndim == 2
    n, c = x.shape
    h1 = c // 2            # matches torch slicing: second half gets the extra col
    h2 = c - h1

    if use_pallas is None:
        use_pallas = (h1 % _LANE == 0) and (h1 == h2) and (n * c >= _MIN_PALLAS_ELEMS)
    if not use_pallas:
        return x[:, :h1], x[:, h1:]

    itemsize = jnp.dtype(x.dtype).itemsize
    tn = _row_tile(n, 2 * c * itemsize)      # (c + h1 + h2) bytes per row per step
    grid = (pl.cdiv(n, tn),)

    return pl.pallas_call(
        _split_kernel,
        out_shape=(
            jax.ShapeDtypeStruct((n, h1), x.dtype),
            jax.ShapeDtypeStruct((n, h2), x.dtype),
        ),
        grid=grid,
        in_specs=[pl.BlockSpec((tn, c), lambda i: (i, 0))],
        out_specs=(
            pl.BlockSpec((tn, h1), lambda i: (i, 0)),
            pl.BlockSpec((tn, h2), lambda i: (i, 0)),
        ),
        compiler_params=pltpu.CompilerParams(dimension_semantics=("parallel",)),
        cost_estimate=pl.CostEstimate(
            flops=0, transcendentals=0, bytes_accessed=2 * n * c * itemsize),
    )(x)


# ----------------------------------------------------------------------------
# Module-equivalent wrapper
# ----------------------------------------------------------------------------
class IOEncoding:
    """JAX/Pallas equivalent of boltzmanngen IOEncoding (no parameters)."""

    FIELD_IN = "input"
    FIELDS_IO = ("first_channel", "second_channel")
    FIELD_OUT = "output"

    def __init__(self, initial: bool = True):
        self.initial = initial

    def __call__(self, data: dict, inverse: bool = False) -> dict:
        data = dict(data)  # shallow copy; mimic in-place dict update semantics
        if not (self.initial ^ inverse):
            data[self.FIELD_OUT] = concat_features(
                data[self.FIELDS_IO[0]], data[self.FIELDS_IO[1]]
            )
        else:
            c1, c2 = split_features(data[self.FIELD_IN])
            data[self.FIELDS_IO[0]] = c1
            data[self.FIELDS_IO[1]] = c2
        return data


# ----------------------------------------------------------------------------
# Demo / self-test
# ----------------------------------------------------------------------------
if __name__ == "__main__":
    key = jax.random.PRNGKey(0)
    k1, k2, k3 = jax.random.split(key, 3)

    # --- Pallas path: lane-aligned halves (H = 128), modest row count -------
    N, C = 128, 256
    H = C // 2
    x = jax.random.normal(k1, (N, C), dtype=jnp.float32)

    c1, c2 = split_features(x, use_pallas=True)
    c1 = jax.block_until_ready(c1)
    c2 = jax.block_until_ready(c2)
    assert c1.shape == (N, H) and c2.shape == (N, H)
    assert jnp.array_equal(c1, x[:, :H])
    assert jnp.array_equal(c2, x[:, H:])

    out = jax.block_until_ready(concat_features(c1, c2, use_pallas=True))
    assert out.shape == (N, C)
    assert jnp.array_equal(out, x)

    # --- Module-level round trip (heuristic dispatch -> same Pallas path) ---
    mod = IOEncoding(initial=True)
    data = mod({"input": x}, inverse=False)        # split into the two channels
    data = mod(data, inverse=True)                 # concat them back
    assert jnp.array_equal(jax.block_until_ready(data["output"]), x)

    # --- Original tiny model shape (N=8, C=32): fused XLA fallback path -----
    xs = jax.random.normal(k2, (8, 32), dtype=jnp.float32)
    d = IOEncoding(initial=True)({"input": xs})
    assert jnp.array_equal(d["first_channel"], xs[:, :16])
    assert jnp.array_equal(d["second_channel"], xs[:, 16:])
    a_small = jax.random.normal(k3, (8, 16), dtype=jnp.float32)
    d2 = IOEncoding(initial=True)(
        {"first_channel": a_small, "second_channel": d["second_channel"]},
        inverse=True,
    )
    assert jnp.array_equal(
        jax.block_until_ready(d2["output"]),
        jnp.concatenate([a_small, d["second_channel"]], axis=1),
    )

    print("KERNEL_OK")
</pallas_src>

<mosaic_0001>
module attributes {stable_mosaic.version = 11 : i64} {
  func.func @_split_kernel(%arg0: i32, %arg1: memref<128x256xf32, #tpu.memory_space<vmem>>, %arg2: memref<128x128xf32, #tpu.memory_space<vmem>>, %arg3: memref<128x128xf32, #tpu.memory_space<vmem>>) attributes {dimension_semantics = [#tpu.dimension_semantics<parallel>], iteration_bounds = array<i64: 1>, scalar_prefetch = 0 : i64, scratch_operands = 0 : i64, tpu.core_type = #tpu.core_type<tc>, window_params = [{transform_indices = @transform_0, window_bounds = array<i64: 128, 256>}, {transform_indices = @transform_1, window_bounds = array<i64: 128, 128>}, {transform_indices = @transform_2, window_bounds = array<i64: 128, 128>}]} {
    %c0 = arith.constant 0 : index
    %c0_0 = arith.constant 0 : index
    %0 = vector.load %arg1[%c0, %c0_0] : memref<128x256xf32, #tpu.memory_space<vmem>>, vector<128x128xf32>
    %c0_1 = arith.constant 0 : index
    %c0_2 = arith.constant 0 : index
    %1 = vector.load %arg2[%c0_1, %c0_2] : memref<128x128xf32, #tpu.memory_space<vmem>>, vector<128x128xf32>
    tpu.vector_store %arg2[%c0_1, %c0_2], %0 {strides = array<i32>} : memref<128x128xf32, #tpu.memory_space<vmem>>, vector<128x128xf32>,
    %c0_3 = arith.constant 0 : index
    %c128 = arith.constant 128 : index
    %2 = vector.load %arg1[%c0_3, %c128] : memref<128x256xf32, #tpu.memory_space<vmem>>, vector<128x128xf32>
    %c0_4 = arith.constant 0 : index
    %c0_5 = arith.constant 0 : index
    %3 = vector.load %arg3[%c0_4, %c0_5] : memref<128x128xf32, #tpu.memory_space<vmem>>, vector<128x128xf32>
    tpu.vector_store %arg3[%c0_4, %c0_5], %2 {strides = array<i32>} : memref<128x128xf32, #tpu.memory_space<vmem>>, vector<128x128xf32>,
    return
  }
  func.func @transform_0(%arg0: i32) -> (i32, i32) {
    %c0_i32 = arith.constant 0 : i32
    %c0_i32_0 = arith.constant 0 : i32
    return %arg0, %c0_i32 : i32, i32
  }
  func.func @transform_1(%arg0: i32) -> (i32, i32) {
    %c0_i32 = arith.constant 0 : i32
    %c0_i32_0 = arith.constant 0 : i32
    return %arg0, %c0_i32 : i32, i32
  }
  func.func @transform_2(%arg0: i32) -> (i32, i32) {
    %c0_i32 = arith.constant 0 : i32
    %c0_i32_0 = arith.constant 0 : i32
    return %arg0, %c0_i32 : i32, i32
  }
}

</mosaic_0001>

<llo_original>
// kernel: tpu_custom_call.1
$region0: #{tpu_custom_call.1}
  #allocation0 [shape = 'u32[]', space=smem, size = 0x4, offset = 0x4, fixed_abs, tag = 'smem constant byte address 0x4 - core index']
  #allocation1 [shape = 'u32[144,128]{1,0:T(1,128)}', space=vmem, size = 0x12000, scoped, tag = 'internal scratch']
  %s0 = inlined_call_operand.hbm [shape: f32[128,256], index: 0, kind: input, shape index: {}]
  %s1 = inlined_call_operand.hbm [shape: f32[128,128], index: 1, kind: output, shape index: {0}]
  %s2 = inlined_call_operand.hbm [shape: f32[128,128], index: 2, kind: output, shape index: {1}]
  %3 = xla_tuple %s1, %s2
  %s4 = sld [smem:[#allocation0]]
  $region26: #{tpu_custom_call.1} parent=0
    _
  %s6 = ssub.s32 1, %s4
  %s7 = scalar_select 0, %s6, %s4
  $region1: #{tpu_custom_call.1} parent=0
    #allocation2 [shape = 'u8[131072]{0}', space=vmem, size = 0x20000, scoped, tag = 'input window, operand 0, single buffered']
    #allocation3 [shape = 's32[1]{0}', space=sflag, size = 0x4, scoped, tag = 'scoped memory for tpu_custom_call.1']
    #allocation4 [shape = 's32[1]{0}', space=sflag, size = 0x4, scoped, tag = 'scoped memory for tpu_custom_call.1']
    #allocation5 [shape = 'u8[65536]{0}', space=vmem, size = 0x10000, scoped, tag = 'output window, operand 0, single buffered']
    #allocation6 [shape = 'u8[65536]{0}', space=vmem, size = 0x10000, scoped, tag = 'output window, operand 1, single buffered']
    #allocation7 [shape = 's32[1]{0}', space=sflag, size = 0x4, scoped, tag = 'scoped memory for tpu_custom_call.1']
    %8 = vsyncpa [#allocation3], 0
    %9 = vsyncpa [#allocation4], 0
    %10 = vsyncpa [#allocation7], 0
    // Predicated region
    $region2: #{tpu_custom_call.1} parent=1 // pred_check
      _
    $region3: #{tpu_custom_call.1} parent=1 // pred_check_branch
      %12 = sbr.rel (0) target = $region5
    $region4: #{tpu_custom_call.1} parent=1 // pred_region
      %s14 = ssub.s32 4096, 4096
      %15 = vsyncadd [#allocation3], %s14
      %s16 = sshll.u32 [#allocation2], 4
      %s17 = int_to_ptr.vmem [resolvable:$true] %s16
      %22 = dma.hbm_to_vmem [thread:$0]  %s0, 4096, %s17, [#allocation3], 256, 256, 16
    $region5: #{tpu_custom_call.1} parent=1 // pred_fallthru
      _
    // Predicated region
    $region6: #{tpu_custom_call.1} parent=1 // pred_check
      _
    $region7: #{tpu_custom_call.1} parent=1 // pred_check_branch
      %24 = sbr.rel (0) target = $region9
    $region8: #{tpu_custom_call.1} parent=1 // pred_region
      %25 = dma.done [#allocation3], 4096
    $region9: #{tpu_custom_call.1} parent=1 // pred_fallthru
      _
    %v26 = vld [vmem:[#allocation2] sm:$0xff]
    %v27 = vld [vmem:[#allocation2 + $0x10] sm:$0xff]
    %v28 = vld [vmem:[#allocation2 + $0x20] sm:$0xff]
    %v29 = vld [vmem:[#allocation2 + $0x30] sm:$0xff]
    %v30 = vld [vmem:[#allocation2 + $0x40] sm:$0xff]
    %v31 = vld [vmem:[#allocation2 + $0x50] sm:$0xff]
    %v32 = vld [vmem:[#allocation2 + $0x60] sm:$0xff]
    %v33 = vld [vmem:[#allocation2 + $0x70] sm:$0xff]
    %v34 = vld [vmem:[#allocation2 + $0x80] sm:$0xff]
    %v35 = vld [vmem:[#allocation2 + $0x90] sm:$0xff]
    %v36 = vld [vmem:[#allocation2 + $0xa0] sm:$0xff]
    %v37 = vld [vmem:[#allocation2 + $0xb0] sm:$0xff]
    %v38 = vld [vmem:[#allocation2 + $0xc0] sm:$0xff]
    %v39 = vld [vmem:[#allocation2 + $0xd0] sm:$0xff]
    %v40 = vld [vmem:[#allocation2 + $0xe0] sm:$0xff]
    %v41 = vld [vmem:[#allocation2 + $0xf0] sm:$0xff]
    %42 = vst [vmem:[#allocation5] sm:$0xff] %v26
    %43 = vst [vmem:[#allocation5 + $0x8] sm:$0xff] %v27
    %44 = vst [vmem:[#allocation5 + $0x10] sm:$0xff] %v28
    %45 = vst [vmem:[#allocation5 + $0x18] sm:$0xff] %v29
    %46 = vst [vmem:[#allocation5 + $0x20] sm:$0xff] %v30
    %47 = vst [vmem:[#allocation5 + $0x28] sm:$0xff] %v31
    %48 = vst [vmem:[#allocation5 + $0x30] sm:$0xff] %v32
    %49 = vst [vmem:[#allocation5 + $0x38] sm:$0xff] %v33
    %50 = vst [vmem:[#allocation5 + $0x40] sm:$0xff] %v34
    %51 = vst [vmem:[#allocation5 + $0x48] sm:$0xff] %v35
    %52 = vst [vmem:[#allocation5 + $0x50] sm:$0xff] %v36
    %53 = vst [vmem:[#allocation5 + $0x58] sm:$0xff] %v37
    %54 = vst [vmem:[#allocation5 + $0x60] sm:$0xff] %v38
    %55 = vst [vmem:[#allocation5 + $0x68] sm:$0xff] %v39
    %56 = vst [vmem:[#allocation5 + $0x70] sm:$0xff] %v40
    %57 = vst [vmem:[#allocation5 + $0x78] sm:$0xff] %v41
    %v58 = vld [vmem:[#allocation2 + $0x8] sm:$0xff]
    %v59 = vld [vmem:[#allocation2 + $0x18] sm:$0xff]
    %v60 = vld [vmem:[#allocation2 + $0x28] sm:$0xff]
    %v61 = vld [vmem:[#allocation2 + $0x38] sm:$0xff]
    %v62 = vld [vmem:[#allocation2 + $0x48] sm:$0xff]
    %v63 = vld [vmem:[#allocation2 + $0x58] sm:$0xff]
    %v64 = vld [vmem:[#allocation2 + $0x68] sm:$0xff]
    %v65 = vld [vmem:[#allocation2 + $0x78] sm:$0xff]
    %v66 = vld [vmem:[#allocation2 + $0x88] sm:$0xff]
    %v67 = vld [vmem:[#allocation2 + $0x98] sm:$0xff]
    %v68 = vld [vmem:[#allocation2 + $0xa8] sm:$0xff]
    %v69 = vld [vmem:[#allocation2 + $0xb8] sm:$0xff]
    %v70 = vld [vmem:[#allocation2 + $0xc8] sm:$0xff]
    %v71 = vld [vmem:[#allocation2 + $0xd8] sm:$0xff]
    %v72 = vld [vmem:[#allocation2 + $0xe8] sm:$0xff]
    %v73 = vld [vmem:[#allocation2 + $0xf8] sm:$0xff]
    %74 = vst [vmem:[#allocation6] sm:$0xff] %v58
    %75 = vst [vmem:[#allocation6 + $0x8] sm:$0xff] %v59
    %76 = vst [vmem:[#allocation6 + $0x10] sm:$0xff] %v60
    %77 = vst [vmem:[#allocation6 + $0x18] sm:$0xff] %v61
    %78 = vst [vmem:[#allocation6 + $0x20] sm:$0xff] %v62
    %79 = vst [vmem:[#allocation6 + $0x28] sm:$0xff] %v63
    %80 = vst [vmem:[#allocation6 + $0x30] sm:$0xff] %v64
    %81 = vst [vmem:[#allocation6 + $0x38] sm:$0xff] %v65
    %82 = vst [vmem:[#allocation6 + $0x40] sm:$0xff] %v66
    %83 = vst [vmem:[#allocation6 + $0x48] sm:$0xff] %v67
    %84 = vst [vmem:[#allocation6 + $0x50] sm:$0xff] %v68
    %85 = vst [vmem:[#allocation6 + $0x58] sm:$0xff] %v69
    %86 = vst [vmem:[#allocation6 + $0x60] sm:$0xff] %v70
    %87 = vst [vmem:[#allocation6 + $0x68] sm:$0xff] %v71
    %88 = vst [vmem:[#allocation6 + $0x70] sm:$0xff] %v72
    %89 = vst [vmem:[#allocation6 + $0x78] sm:$0xff] %v73
    // Predicated region
    $region10: #{tpu_custom_call.1} parent=1 // pred_check
      _
    $region11: #{tpu_custom_call.1} parent=1 // pred_check_branch
      %91 = sbr.rel (0) target = $region13
    $region12: #{tpu_custom_call.1} parent=1 // pred_region
      %s93 = ssub.s32 2048, 2048
      %94 = vsyncadd [#allocation4], %s93
      %s95 = sshll.u32 [#allocation5], 4
      %s96 = int_to_ptr.vmem [resolvable:$true] %s95
      %101 = dma.vmem_to_hbm [thread:$0]  %s96, 2048, %s1, [#allocation4], 128, 128, 8
    $region13: #{tpu_custom_call.1} parent=1 // pred_fallthru
      _
    // Predicated region
    $region14: #{tpu_custom_call.1} parent=1 // pred_check
      _
    $region15: #{tpu_custom_call.1} parent=1 // pred_check_branch
      %103 = sbr.rel (0) target = $region17
    $region16: #{tpu_custom_call.1} parent=1 // pred_region
      %s105 = ssub.s32 2048, 2048
      %106 = vsyncadd [#allocation7], %s105
      %s107 = sshll.u32 [#allocation6], 4
      %s108 = int_to_ptr.vmem [resolvable:$true] %s107
      %113 = dma.vmem_to_hbm [thread:$0]  %s108, 2048, %s2, [#allocation7], 128, 128, 8
    $region17: #{tpu_custom_call.1} parent=1 // pred_fallthru
      _
    // Predicated region
    $region18: #{tpu_custom_call.1} parent=1 // pred_check
      _
    $region19: #{tpu_custom_call.1} parent=1 // pred_check_branch
      %115 = sbr.rel (0) target = $region21
    $region20: #{tpu_custom_call.1} parent=1 // pred_region
      %116 = dma.done [#allocation4], 2048
    $region21: #{tpu_custom_call.1} parent=1 // pred_fallthru
      _
    // Predicated region
    $region22: #{tpu_custom_call.1} parent=1 // pred_check
      _
    $region23: #{tpu_custom_call.1} parent=1 // pred_check_branch
      %118 = sbr.rel (0) target = $region25
    $region24: #{tpu_custom_call.1} parent=1 // pred_region
      %119 = dma.done [#allocation7], 2048
    $region25: #{tpu_custom_call.1} parent=1 // pred_fallthru
      _
    %120 = vsyncpa [#allocation3], 1
    %121 = vsyncpa [#allocation4], 1
    %122 = vsyncpa [#allocation7], 1

</llo_original>
